<compile_context>
chip_gen: v5e
topology: v5e:2x2
jax: 0.10.0
libtpu: 0.0.40
codegen_flags: <defaults>
</compile_context>

<pallas_src>
import functools

import jax
import jax.numpy as jnp
from jax import lax
from jax.experimental import pallas as pl
from jax.experimental.pallas import tpu as pltpu


def _round_up(x, m):
    return ((x + m - 1) // m) * m


def _variablenet_kernel(n_layers, x_ref, w0_ref, b0_ref, wh_ref, bh_ref,
                        wl_ref, bl_ref, out_ref):
    """Fused MLP forward for one (TB, in_features) batch tile.

    Weights are bf16; dots accumulate in f32 (preferred_element_type). Hidden
    and output widths are pre-padded to multiples of 128 by the wrapper, so
    every vreg and the final store are lane-dense (no masked vst).
    """
    # layer[0]: Linear(in_features -> H_pad), NO activation (matches PyTorch forward)
    h = jnp.dot(x_ref[...].astype(jnp.bfloat16), w0_ref[...],
                preferred_element_type=jnp.float32) + b0_ref[...]

    # layer[1..n_layers]: ReLU(Linear(H_pad -> H_pad)), stacked weights/biases
    def body(i, h):
        z = jnp.dot(h.astype(jnp.bfloat16), wh_ref[i],
                    preferred_element_type=jnp.float32) + bh_ref[i]
        return jnp.maximum(z, 0.0)

    if n_layers > 0:
        h = lax.fori_loop(0, n_layers, body, h, unroll=True)

    # layer[n_layers + 1]: Linear(H_pad -> C_pad), no activation
    out_ref[...] = (jnp.dot(h.astype(jnp.bfloat16), wl_ref[...],
                            preferred_element_type=jnp.float32)
                    + bl_ref[...]).astype(out_ref.dtype)


def variablenet_forward(x, params, *, n_layers, block_batch=None):
    """params: list of (W, b) with W shaped (in_features, out_features), f32."""
    batch, in_features = x.shape
    n_units = params[0][0].shape[1]
    num_classes = params[-1][0].shape[1]

    h_pad = _round_up(max(n_units, 128), 128)     # lane-dense hidden width
    c_pad = _round_up(max(num_classes, 128), 128)  # lane-dense output width

    # ---- pack / pad parameters (weights -> bf16, biases -> f32, 2-D) ----
    def pad_w(w, rows, cols):
        return jnp.pad(w, ((0, rows - w.shape[0]),
                           (0, cols - w.shape[1]))).astype(jnp.bfloat16)

    def pad_b(b, cols):
        return jnp.pad(b, (0, cols - b.shape[0])).astype(jnp.float32).reshape(1, cols)

    w0, b0 = params[0]
    wl, bl = params[-1]
    w0_p = pad_w(w0, in_features, h_pad)
    b0_p = pad_b(b0, h_pad)
    wl_p = pad_w(wl, h_pad, c_pad)
    bl_p = pad_b(bl, c_pad)

    if n_layers > 0:
        wh_p = jnp.stack([pad_w(w, h_pad, h_pad) for (w, _) in params[1:1 + n_layers]])
        bh_p = jnp.stack([pad_b(b, h_pad) for (_, b) in params[1:1 + n_layers]])
    else:  # keep kernel signature uniform; loop runs 0 trips
        wh_p = jnp.zeros((1, h_pad, h_pad), jnp.bfloat16)
        bh_p = jnp.zeros((1, 1, h_pad), jnp.float32)

    # ---- batch tiling: MXU-aligned tile, weights resident, x/out pipelined ----
    if block_batch is None:
        block_batch = 256 if batch >= 256 else max(8, _round_up(batch, 8))
    block_batch = max(8, _round_up(block_batch, 8))
    padded_batch = _round_up(batch, block_batch)
    x = x.astype(jnp.float32)
    if padded_batch != batch:
        x = jnp.pad(x, ((0, padded_batch - batch), (0, 0)))

    grid = (padded_batch // block_batch,)

    in_specs = [
        pl.BlockSpec((block_batch, in_features), lambda i: (i, 0)),  # x: per-tile DMA
        pl.BlockSpec(w0_p.shape, lambda i: (0, 0)),                  # weights: VMEM-resident
        pl.BlockSpec(b0_p.shape, lambda i: (0, 0)),
        pl.BlockSpec(wh_p.shape, lambda i: (0, 0, 0)),
        pl.BlockSpec(bh_p.shape, lambda i: (0, 0, 0)),
        pl.BlockSpec(wl_p.shape, lambda i: (0, 0)),
        pl.BlockSpec(bl_p.shape, lambda i: (0, 0)),
    ]
    out_spec = pl.BlockSpec((block_batch, c_pad), lambda i: (i, 0))

    # Advisory cost estimate for the XLA scheduler.
    flops = 2 * padded_batch * (in_features * h_pad
                                + n_layers * h_pad * h_pad
                                + h_pad * c_pad)
    param_bytes = sum(int(p.size) * p.dtype.itemsize
                      for p in (w0_p, b0_p, wh_p, bh_p, wl_p, bl_p))
    bytes_accessed = int(x.size) * 4 + param_bytes + padded_batch * c_pad * 4
    cost = pl.CostEstimate(flops=int(flops), transcendentals=0,
                           bytes_accessed=int(bytes_accessed))

    # VMEM budget: resident params + double-buffered x/out tiles. Only raise the
    # scoped limit when needed; stay well under v7x's 64 MiB physical VMEM.
    vmem_needed = param_bytes + 2 * (block_batch * in_features * 4
                                     + block_batch * c_pad * 4)
    compiler_kwargs = dict(dimension_semantics=("parallel",))  # megacore on v7x
    if vmem_needed > 12 * 1024 * 1024:
        compiler_kwargs["vmem_limit_bytes"] = int(min(56 * 1024 * 1024,
                                                      2 * vmem_needed))

    kernel = functools.partial(_variablenet_kernel, n_layers)

    out_padded = pl.pallas_call(
        kernel,
        out_shape=jax.ShapeDtypeStruct((padded_batch, c_pad), jnp.float32),
        grid=grid,
        in_specs=in_specs,
        out_specs=out_spec,
        compiler_params=pltpu.CompilerParams(**compiler_kwargs),
        cost_estimate=cost,
    )(x, w0_p, b0_p, wh_p, bh_p, wl_p, bl_p)

    return out_padded[:batch, :num_classes]


def init_variablenet_params(key, num_classes, n_units, n_layers, in_features=6):
    """Deterministic PyTorch-style (uniform +-1/sqrt(fan_in)) init.

    Returns list of (W, b) with W shaped (in_features, out_features), f32."""
    dims = [(in_features, n_units)]
    dims += [(n_units, n_units) for _ in range(n_layers)]
    dims += [(n_units, num_classes)]

    params = []
    for (fan_in, fan_out) in dims:
        key, kw, kb = jax.random.split(key, 3)
        bound = 1.0 / jnp.sqrt(jnp.float32(fan_in))
        w = jax.random.uniform(kw, (fan_in, fan_out), jnp.float32, -bound, bound)
        b = jax.random.uniform(kb, (fan_out,), jnp.float32, -bound, bound)
        params.append((w, b))
    return params


def variablenet_reference(x, params, *, n_layers):
    """Pure-JAX f32 reference matching the PyTorch forward."""
    w0, b0 = params[0]
    h = x @ w0 + b0
    for i in range(1, n_layers + 1):
        w, b = params[i]
        h = jnp.maximum(h @ w + b, 0.0)
    w_last, b_last = params[-1]
    return h @ w_last + b_last


def variablenet_reference_bf16(x, params, *, n_layers):
    """Reference mirroring the kernel's bf16-matmul / f32-accumulate math."""
    h = x.astype(jnp.float32)
    for idx, (w, b) in enumerate(params):
        z = jnp.dot(h.astype(jnp.bfloat16), w.astype(jnp.bfloat16),
                    preferred_element_type=jnp.float32) + b
        h = jnp.maximum(z, 0.0) if 1 <= idx <= n_layers else z
    return h


if __name__ == "__main__":
    num_classes = 4
    n_units = 32
    n_layers = 2
    batch = 37  # deliberately not a multiple of the batch tile (exercises padding)

    key = jax.random.PRNGKey(0)
    key, kx = jax.random.split(key)
    x = jax.random.normal(kx, (batch, 6), jnp.float32)

    params = init_variablenet_params(key, num_classes, n_units, n_layers)

    # Small block_batch so the demo exercises multiple pipelined grid steps.
    out = variablenet_forward(x, params, n_layers=n_layers, block_batch=16)
    out = jax.block_until_ready(out)
    assert out.shape == (batch, num_classes)

    ref_bf16 = variablenet_reference_bf16(x, params, n_layers=n_layers)
    ref_f32 = variablenet_reference(x, params, n_layers=n_layers)
    assert jnp.allclose(out, ref_bf16, atol=1e-2, rtol=1e-2), "mismatch vs bf16 reference"
    assert jnp.allclose(out, ref_f32, atol=5e-2, rtol=5e-2), "mismatch vs f32 reference"

    print("KERNEL_OK")
</pallas_src>

<mosaic_0001>
module attributes {stable_mosaic.version = 11 : i64} {
  func.func @_variablenet_kernel(%arg0: i32, %arg1: memref<16x6xf32, #tpu.memory_space<vmem>>, %arg2: memref<6x128xbf16, #tpu.memory_space<vmem>>, %arg3: memref<1x128xf32, #tpu.memory_space<vmem>>, %arg4: memref<2x128x128xbf16, #tpu.memory_space<vmem>>, %arg5: memref<2x1x128xf32, #tpu.memory_space<vmem>>, %arg6: memref<128x128xbf16, #tpu.memory_space<vmem>>, %arg7: memref<1x128xf32, #tpu.memory_space<vmem>>, %arg8: memref<16x128xf32, #tpu.memory_space<vmem>>) attributes {dimension_semantics = [#tpu.dimension_semantics<parallel>], iteration_bounds = array<i64: 3>, scalar_prefetch = 0 : i64, scratch_operands = 0 : i64, tpu.core_type = #tpu.core_type<tc>, window_params = [{transform_indices = @transform_0, window_bounds = array<i64: 16, 6>}, {pipeline_mode = #tpu.pipeline_mode<synchronous>, transform_indices = @transform_1, window_bounds = array<i64: 6, 128>}, {pipeline_mode = #tpu.pipeline_mode<synchronous>, transform_indices = @transform_2, window_bounds = array<i64: 1, 128>}, {pipeline_mode = #tpu.pipeline_mode<synchronous>, transform_indices = @transform_3, window_bounds = array<i64: 2, 128, 128>}, {pipeline_mode = #tpu.pipeline_mode<synchronous>, transform_indices = @transform_4, window_bounds = array<i64: 2, 1, 128>}, {pipeline_mode = #tpu.pipeline_mode<synchronous>, transform_indices = @transform_5, window_bounds = array<i64: 128, 128>}, {pipeline_mode = #tpu.pipeline_mode<synchronous>, transform_indices = @transform_6, window_bounds = array<i64: 1, 128>}, {transform_indices = @transform_7, window_bounds = array<i64: 16, 128>}]} {
    %c0 = arith.constant 0 : index
    %c0_0 = arith.constant 0 : index
    %0 = vector.load %arg1[%c0, %c0_0] : memref<16x6xf32, #tpu.memory_space<vmem>>, vector<16x6xf32>
    %1 = arith.truncf %0 : vector<16x6xf32> to vector<16x6xbf16>
    %c0_1 = arith.constant 0 : index
    %c0_2 = arith.constant 0 : index
    %2 = vector.load %arg2[%c0_1, %c0_2] : memref<6x128xbf16, #tpu.memory_space<vmem>>, vector<6x128xbf16>
    %cst = arith.constant dense<0.000000e+00> : vector<16x128xf32>
    %3 = tpu.matmul %1, %2, %cst {dimension_numbers = #tpu.dot_dimension_numbers<[1], [0], [0], [1], [0, 0, 1, 1], [], []>} : vector<16x6xbf16>, vector<6x128xbf16>, vector<16x128xf32> -> vector<16x128xf32>
    %c0_3 = arith.constant 0 : index
    %c0_4 = arith.constant 0 : index
    %4 = vector.load %arg3[%c0_3, %c0_4] : memref<1x128xf32, #tpu.memory_space<vmem>>, vector<1x128xf32>
    %5 = vector.broadcast %4 : vector<1x128xf32> to vector<16x128xf32>
    %6 = arith.addf %3, %5 : vector<16x128xf32>
    %c0_i32 = arith.constant 0 : i32
    %7 = arith.truncf %6 : vector<16x128xf32> to vector<16x128xbf16>
    %8 = arith.index_cast %c0_i32 : i32 to index
    %c0_5 = arith.constant 0 : index
    %c0_6 = arith.constant 0 : index
    %9 = vector.load %arg4[%8, %c0_5, %c0_6] : memref<2x128x128xbf16, #tpu.memory_space<vmem>>, vector<1x128x128xbf16>
    %10 = vector.shape_cast %9 : vector<1x128x128xbf16> to vector<128x128xbf16>
    %cst_7 = arith.constant dense<0.000000e+00> : vector<16x128xf32>
    %11 = tpu.matmul %7, %10, %cst_7 {dimension_numbers = #tpu.dot_dimension_numbers<[1], [0], [0], [1], [0, 0, 1, 1], [], []>} : vector<16x128xbf16>, vector<128x128xbf16>, vector<16x128xf32> -> vector<16x128xf32>
    %12 = arith.index_cast %c0_i32 : i32 to index
    %c0_8 = arith.constant 0 : index
    %c0_9 = arith.constant 0 : index
    %13 = vector.load %arg5[%12, %c0_8, %c0_9] : memref<2x1x128xf32, #tpu.memory_space<vmem>>, vector<1x1x128xf32>
    %14 = vector.shape_cast %13 : vector<1x1x128xf32> to vector<1x128xf32>
    %15 = vector.broadcast %14 : vector<1x128xf32> to vector<16x128xf32>
    %16 = arith.addf %11, %15 : vector<16x128xf32>
    %cst_10 = arith.constant 0.000000e+00 : f32
    %17 = vector.broadcast %cst_10 : f32 to vector<16x128xf32>
    %18 = arith.maximumf %16, %17 : vector<16x128xf32>
    %c1_i32 = arith.constant 1 : i32
    %19 = arith.truncf %18 : vector<16x128xf32> to vector<16x128xbf16>
    %20 = arith.index_cast %c1_i32 : i32 to index
    %c0_11 = arith.constant 0 : index
    %c0_12 = arith.constant 0 : index
    %21 = vector.load %arg4[%20, %c0_11, %c0_12] : memref<2x128x128xbf16, #tpu.memory_space<vmem>>, vector<1x128x128xbf16>
    %22 = vector.shape_cast %21 : vector<1x128x128xbf16> to vector<128x128xbf16>
    %cst_13 = arith.constant dense<0.000000e+00> : vector<16x128xf32>
    %23 = tpu.matmul %19, %22, %cst_13 {dimension_numbers = #tpu.dot_dimension_numbers<[1], [0], [0], [1], [0, 0, 1, 1], [], []>} : vector<16x128xbf16>, vector<128x128xbf16>, vector<16x128xf32> -> vector<16x128xf32>
    %24 = arith.index_cast %c1_i32 : i32 to index
    %c0_14 = arith.constant 0 : index
    %c0_15 = arith.constant 0 : index
    %25 = vector.load %arg5[%24, %c0_14, %c0_15] : memref<2x1x128xf32, #tpu.memory_space<vmem>>, vector<1x1x128xf32>
    %26 = vector.shape_cast %25 : vector<1x1x128xf32> to vector<1x128xf32>
    %27 = vector.broadcast %26 : vector<1x128xf32> to vector<16x128xf32>
    %28 = arith.addf %23, %27 : vector<16x128xf32>
    %cst_16 = arith.constant 0.000000e+00 : f32
    %29 = vector.broadcast %cst_16 : f32 to vector<16x128xf32>
    %30 = arith.maximumf %28, %29 : vector<16x128xf32>
    %c2_i32 = arith.constant 2 : i32
    %31 = arith.truncf %30 : vector<16x128xf32> to vector<16x128xbf16>
    %c0_17 = arith.constant 0 : index
    %c0_18 = arith.constant 0 : index
    %32 = vector.load %arg6[%c0_17, %c0_18] : memref<128x128xbf16, #tpu.memory_space<vmem>>, vector<128x128xbf16>
    %cst_19 = arith.constant dense<0.000000e+00> : vector<16x128xf32>
    %33 = tpu.matmul %31, %32, %cst_19 {dimension_numbers = #tpu.dot_dimension_numbers<[1], [0], [0], [1], [0, 0, 1, 1], [], []>} : vector<16x128xbf16>, vector<128x128xbf16>, vector<16x128xf32> -> vector<16x128xf32>
    %c0_20 = arith.constant 0 : index
    %c0_21 = arith.constant 0 : index
    %34 = vector.load %arg7[%c0_20, %c0_21] : memref<1x128xf32, #tpu.memory_space<vmem>>, vector<1x128xf32>
    %35 = vector.broadcast %34 : vector<1x128xf32> to vector<16x128xf32>
    %36 = arith.addf %33, %35 : vector<16x128xf32>
    %c0_22 = arith.constant 0 : index
    %c0_23 = arith.constant 0 : index
    %37 = vector.load %arg8[%c0_22, %c0_23] : memref<16x128xf32, #tpu.memory_space<vmem>>, vector<16x128xf32>
    tpu.vector_store %arg8[%c0_22, %c0_23], %36 {strides = array<i32>} : memref<16x128xf32, #tpu.memory_space<vmem>>, vector<16x128xf32>,
    return
  }
  func.func @transform_0(%arg0: i32) -> (i32, i32) {
    %c0_i32 = arith.constant 0 : i32
    %c0_i32_0 = arith.constant 0 : i32
    return %arg0, %c0_i32 : i32, i32
  }
  func.func @transform_1(%arg0: i32) -> (i32, i32) {
    %c0_i32 = arith.constant 0 : i32
    %c0_i32_0 = arith.constant 0 : i32
    %c0_i32_1 = arith.constant 0 : i32
    return %c0_i32, %c0_i32_0 : i32, i32
  }
  func.func @transform_2(%arg0: i32) -> (i32, i32) {
    %c0_i32 = arith.constant 0 : i32
    %c0_i32_0 = arith.constant 0 : i32
    %c0_i32_1 = arith.constant 0 : i32
    return %c0_i32, %c0_i32_0 : i32, i32
  }
  func.func @transform_3(%arg0: i32) -> (i32, i32, i32) {
    %c0_i32 = arith.constant 0 : i32
    %c0_i32_0 = arith.constant 0 : i32
    %c0_i32_1 = arith.constant 0 : i32
    %c0_i32_2 = arith.constant 0 : i32
    return %c0_i32, %c0_i32_0, %c0_i32_1 : i32, i32, i32
  }
  func.func @transform_4(%arg0: i32) -> (i32, i32, i32) {
    %c0_i32 = arith.constant 0 : i32
    %c0_i32_0 = arith.constant 0 : i32
    %c0_i32_1 = arith.constant 0 : i32
    %c0_i32_2 = arith.constant 0 : i32
    return %c0_i32, %c0_i32_0, %c0_i32_1 : i32, i32, i32
  }
  func.func @transform_5(%arg0: i32) -> (i32, i32) {
    %c0_i32 = arith.constant 0 : i32
    %c0_i32_0 = arith.constant 0 : i32
    %c0_i32_1 = arith.constant 0 : i32
    return %c0_i32, %c0_i32_0 : i32, i32
  }
  func.func @transform_6(%arg0: i32) -> (i32, i32) {
    %c0_i32 = arith.constant 0 : i32
    %c0_i32_0 = arith.constant 0 : i32
    %c0_i32_1 = arith.constant 0 : i32
    return %c0_i32, %c0_i32_0 : i32, i32
  }
  func.func @transform_7(%arg0: i32) -> (i32, i32) {
    %c0_i32 = arith.constant 0 : i32
    %c0_i32_0 = arith.constant 0 : i32
    return %arg0, %c0_i32 : i32, i32
  }
}

</mosaic_0001>

<llo_original>
// kernel: tpu_custom_call.1
$region0: #{tpu_custom_call.1}
  #allocation0 [shape = 'u32[]', space=smem, size = 0x4, offset = 0x4, fixed_abs, tag = 'smem constant byte address 0x4 - core index']
  #allocation1 [shape = 'u32[72,128]{1,0:T(1,128)}', space=vmem, size = 0x9000, scoped, tag = 'internal scratch']
  %s0 = inlined_call_operand.vmem [shape: f32[48,6], index: 0, kind: input, shape index: {}]
  %s1 = inlined_call_operand.vmem [shape: bf16[6,128], index: 1, kind: input, shape index: {}]
  %s2 = inlined_call_operand.vmem [shape: f32[1,128], index: 2, kind: input, shape index: {}]
  %s3 = inlined_call_operand.hbm [shape: bf16[2,128,128], index: 3, kind: input, shape index: {}]
  %s4 = inlined_call_operand.vmem [shape: f32[2,1,128], index: 4, kind: input, shape index: {}]
  %s5 = inlined_call_operand.hbm [shape: bf16[128,128], index: 5, kind: input, shape index: {}]
  %s6 = inlined_call_operand.vmem [shape: f32[1,128], index: 6, kind: input, shape index: {}]
  %s7 = inlined_call_operand.hbm [shape: f32[48,128], index: 7, kind: output, shape index: {}]
  %s8 = sld [smem:[#allocation0]]
  $region69: #{tpu_custom_call.1} parent=0
    _
  %s10 = ssub.s32 1, %s8
  %s11 = scalar_select 0, %s10, %s8
  $region1: #{tpu_custom_call.1} parent=0
    #allocation2 [shape = 'u8[65536]{0}', space=vmem, size = 0x10000, scoped, tag = 'input window, operand 3, single buffered']
    #allocation3 [shape = 's32[2]{0}', space=sflag, size = 0x8, scoped, tag = 'scoped memory for tpu_custom_call.1']
    #allocation4 [shape = 's32[2]{0}', space=sflag, size = 0x8, scoped, tag = 'scoped memory for tpu_custom_call.1']
    #allocation5 [shape = 'u8[32768]{0}', space=vmem, size = 0x8000, scoped, tag = 'input window, operand 5, single buffered']
    #allocation6 [shape = 's32[1]{0}', space=sflag, size = 0x4, scoped, tag = 'scoped memory for tpu_custom_call.1']
    #allocation7 [shape = 'u8[16384]{0}', space=vmem, size = 0x4000, scoped, tag = 'output window, operand 0']
    %12 = vsyncpa [#allocation3], 0
    %13 = vsyncpa [#allocation6], 0
    %14 = vsyncpa [#allocation4], 0
    %s15 = scalar_lea.sflag [#allocation4], 1
    %16 = vsyncpa %s15, 0
    loop: start=0, step=1, limit=5
    $region2: #{tpu_custom_call.1} parent=1 // loop_pre_header
      _
    $region3: #{tpu_custom_call.1} parent=1 // loop_header
      %s18 = sphi 0, %s22
      %p19 = scmp.ge.s32.totalorder %s18, 5
      %s28 = sphi 0, %s30
      %s31 = sphi 0, %s28
      %s32 = sphi 0, %s31
      %s48 = sphi 0, %s32
      %s52 = sphi 0, %s52
      %s54 = sphi 0, %s52
      %s55 = sphi 0, %s54
      %s69 = sphi 0, %s55
      %s73 = sphi 0, %s73
      %s75 = sphi 0, %s73
      %s76 = sphi 0, %s75
      %s90 = sphi 0, %s76
      %s94 = sphi 0, %s94
      %s96 = sphi 0, %s94
      %s97 = sphi 0, %s96
      %s111 = sphi 0, %s97
      %s115 = sphi 0, %s115
      %s117 = sphi 0, %s115
      %s118 = sphi 0, %s117
      %s132 = sphi 0, %s118
      %s136 = sphi 0, %s136
      %s138 = sphi 0, %s136
      %s139 = sphi 0, %s138
      %s153 = sphi 0, %s139
      %s157 = sphi 0, %s157
      %s159 = sphi 0, %s157
      %s160 = sphi 0, %s159
      %s174 = sphi 0, %s160
      %s180 = sphi 0, %s182
      %s183 = sphi 0, %s180
      %s184 = sphi 0, %s183
      %s200 = sphi 0, %s184
    $region4: #{tpu_custom_call.1} parent=1 // loop_header_branch
      %21 = sbr.rel (%p19) target = $region8
    $region5: #{tpu_custom_call.1} parent=1 // loop_body
      %s23 = ssub.s32 %s18, 1
      %s24 = ssub.s32 %s18, 2
      %s25 = sadd.s32 %s18, 1
      %s26 = ssub.s32 %s18, %s25
      %p27 = scmp.eq.s32.totalorder %s26, 0
      %s29 = sadd.s32 %s28, 1
      %s30 = scalar_select %p27, %s28, %s29
      %p33 = pneg %p27
      %p34 = scmp.eq.s32.totalorder %s18, 2
      %p35 = por %p33, %p34
      %p36 = scmp.ne.s32.totalorder %s28, %s31
      %p37 = scmp.eq.s32.totalorder %s18, 0
      %p38 = por %p36, %p37
      %p39 = scmp.ne.s32.totalorder %s28, %s31
      %p40 = scmp.eq.s32.totalorder %s23, 2
      %p41 = por %p39, %p40
      %p42 = scmp.ne.s32.totalorder %s31, %s32
      %p43 = scmp.eq.s32.totalorder %s23, 0
      %p44 = por %p42, %p43
      %p45 = scmp.ne.s32.totalorder %s31, %s32
      %p46 = scmp.eq.s32.totalorder %s24, 2
      %p47 = por %p45, %p46
      %p49 = scmp.ne.s32.totalorder %s32, %s48
      %p50 = scmp.eq.s32.totalorder %s24, 0
      %p51 = por %p49, %p50
      %s53 = sadd.s32 %s52, 1
      %p56 = scmp.eq.s32.totalorder %s18, 2
      %p57 = scmp.ne.s32.totalorder %s52, %s54
      %p58 = scmp.eq.s32.totalorder %s18, 0
      %p59 = por %p57, %p58
      %p60 = scmp.ne.s32.totalorder %s52, %s54
      %p61 = scmp.eq.s32.totalorder %s23, 2
      %p62 = por %p60, %p61
      %p63 = scmp.ne.s32.totalorder %s54, %s55
      %p64 = scmp.eq.s32.totalorder %s23, 0
      %p65 = por %p63, %p64
      %p66 = scmp.ne.s32.totalorder %s54, %s55
      %p67 = scmp.eq.s32.totalorder %s24, 2
      %p68 = por %p66, %p67
      %p70 = scmp.ne.s32.totalorder %s55, %s69
      %p71 = scmp.eq.s32.totalorder %s24, 0
      %p72 = por %p70, %p71
      %s74 = sadd.s32 %s73, 1
      %p77 = scmp.eq.s32.totalorder %s18, 2
      %p78 = scmp.ne.s32.totalorder %s73, %s75
      %p79 = scmp.eq.s32.totalorder %s18, 0
      %p80 = por %p78, %p79
      %p81 = scmp.ne.s32.totalorder %s73, %s75
      %p82 = scmp.eq.s32.totalorder %s23, 2
      %p83 = por %p81, %p82
      %p84 = scmp.ne.s32.totalorder %s75, %s76
      %p85 = scmp.eq.s32.totalorder %s23, 0
      %p86 = por %p84, %p85
      %p87 = scmp.ne.s32.totalorder %s75, %s76
      %p88 = scmp.eq.s32.totalorder %s24, 2
      %p89 = por %p87, %p88
      %p91 = scmp.ne.s32.totalorder %s76, %s90
      %p92 = scmp.eq.s32.totalorder %s24, 0
      %p93 = por %p91, %p92
      %s95 = sadd.s32 %s94, 1
      %p98 = scmp.eq.s32.totalorder %s18, 2
      %p99 = scmp.ne.s32.totalorder %s94, %s96
      %p100 = scmp.eq.s32.totalorder %s18, 0
      %p101 = por %p99, %p100
      %p102 = scmp.ne.s32.totalorder %s94, %s96
      %p103 = scmp.eq.s32.totalorder %s23, 2
      %p104 = por %p102, %p103
      %p105 = scmp.ne.s32.totalorder %s96, %s97
      %p106 = scmp.eq.s32.totalorder %s23, 0
      %p107 = por %p105, %p106
      %p108 = scmp.ne.s32.totalorder %s96, %s97
      %p109 = scmp.eq.s32.totalorder %s24, 2
      %p110 = por %p108, %p109
      %p112 = scmp.ne.s32.totalorder %s97, %s111
      %p113 = scmp.eq.s32.totalorder %s24, 0
      %p114 = por %p112, %p113
      %s116 = sadd.s32 %s115, 1
      %p119 = scmp.eq.s32.totalorder %s18, 2
      %p120 = scmp.ne.s32.totalorder %s115, %s117
      %p121 = scmp.eq.s32.totalorder %s18, 0
      %p122 = por %p120, %p121
      %p123 = scmp.ne.s32.totalorder %s115, %s117
      %p124 = scmp.eq.s32.totalorder %s23, 2
      %p125 = por %p123, %p124
      %p126 = scmp.ne.s32.totalorder %s117, %s118
      %p127 = scmp.eq.s32.totalorder %s23, 0
      %p128 = por %p126, %p127
      %p129 = scmp.ne.s32.totalorder %s117, %s118
      %p130 = scmp.eq.s32.totalorder %s24, 2
      %p131 = por %p129, %p130
      %p133 = scmp.ne.s32.totalorder %s118, %s132
      %p134 = scmp.eq.s32.totalorder %s24, 0
      %p135 = por %p133, %p134
      %s137 = sadd.s32 %s136, 1
      %p140 = scmp.eq.s32.totalorder %s18, 2
      %p141 = scmp.ne.s32.totalorder %s136, %s138
      %p142 = scmp.eq.s32.totalorder %s18, 0
      %p143 = por %p141, %p142
      %p144 = scmp.ne.s32.totalorder %s136, %s138
      %p145 = scmp.eq.s32.totalorder %s23, 2
      %p146 = por %p144, %p145
      %p147 = scmp.ne.s32.totalorder %s138, %s139
      %p148 = scmp.eq.s32.totalorder %s23, 0
      %p149 = por %p147, %p148
      %p150 = scmp.ne.s32.totalorder %s138, %s139
      %p151 = scmp.eq.s32.totalorder %s24, 2
      %p152 = por %p150, %p151
      %p154 = scmp.ne.s32.totalorder %s139, %s153
      %p155 = scmp.eq.s32.totalorder %s24, 0
      %p156 = por %p154, %p155
      %s158 = sadd.s32 %s157, 1
      %p161 = scmp.eq.s32.totalorder %s18, 2
      %p162 = scmp.ne.s32.totalorder %s157, %s159
      %p163 = scmp.eq.s32.totalorder %s18, 0
      %p164 = por %p162, %p163
      %p165 = scmp.ne.s32.totalorder %s157, %s159
      %p166 = scmp.eq.s32.totalorder %s23, 2
      %p167 = por %p165, %p166
      %p168 = scmp.ne.s32.totalorder %s159, %s160
      %p169 = scmp.eq.s32.totalorder %s23, 0
      %p170 = por %p168, %p169
      %p171 = scmp.ne.s32.totalorder %s159, %s160
      %p172 = scmp.eq.s32.totalorder %s24, 2
      %p173 = por %p171, %p172
      %p175 = scmp.ne.s32.totalorder %s160, %s174
      %p176 = scmp.eq.s32.totalorder %s24, 0
      %p177 = por %p175, %p176
      %s178 = ssub.s32 %s18, %s25
      %p179 = scmp.eq.s32.totalorder %s178, 0
      %s181 = sadd.s32 %s180, 1
      %s182 = scalar_select %p179, %s180, %s181
      %p185 = pneg %p179
      %p186 = scmp.eq.s32.totalorder %s18, 2
      %p187 = por %p185, %p186
      %p188 = scmp.ne.s32.totalorder %s180, %s183
      %p189 = scmp.eq.s32.totalorder %s18, 0
      %p190 = por %p188, %p189
      %p191 = scmp.ne.s32.totalorder %s180, %s183
      %p192 = scmp.eq.s32.totalorder %s23, 2
      %p193 = por %p191, %p192
      %p194 = scmp.ne.s32.totalorder %s183, %s184
      %p195 = scmp.eq.s32.totalorder %s23, 0
      %p196 = por %p194, %p195
      %p197 = scmp.ne.s32.totalorder %s183, %s184
      %p198 = scmp.eq.s32.totalorder %s24, 2
      %p199 = por %p197, %p198
      %p201 = scmp.ne.s32.totalorder %s184, %s200
      %p202 = scmp.eq.s32.totalorder %s24, 0
      %p203 = por %p201, %p202
      %p204 = scmp.le.s32.totalorder 1, %s18
      %p205 = scmp.lt.s32.totalorder %s18, 4
      %p206 = pnand %p204, %p205
      %p207 = pneg %p206
      // Predicated region
      $region9: #{tpu_custom_call.1} parent=5 // pred_check
        _
      $region10: #{tpu_custom_call.1} parent=5 // pred_check_branch
        %209 = sbr.rel (%p206) target = $region12
      $region11: #{tpu_custom_call.1} parent=5 // pred_region
        %s210 = ssub.s32 %s18, 1
        // Predicated region
        $region13: #{tpu_custom_call.1} parent=11 // pred_check
          %p211 = pneg %p65
        $region14: #{tpu_custom_call.1} parent=11 // pred_check_branch
          %213 = sbr.rel (%p211) target = $region16
        $region15: #{tpu_custom_call.1} parent=11 // pred_region
          _
        $region16: #{tpu_custom_call.1} parent=11 // pred_fallthru
          _
        // Predicated region
        $region17: #{tpu_custom_call.1} parent=11 // pred_check
          %p214 = pneg %p86
        $region18: #{tpu_custom_call.1} parent=11 // pred_check_branch
          %216 = sbr.rel (%p214) target = $region20
        $region19: #{tpu_custom_call.1} parent=11 // pred_region
          _
        $region20: #{tpu_custom_call.1} parent=11 // pred_fallthru
          _
        // Predicated region
        $region21: #{tpu_custom_call.1} parent=11 // pred_check
          %p217 = pneg %p107
        $region22: #{tpu_custom_call.1} parent=11 // pred_check_branch
          %219 = sbr.rel (%p217) target = $region24
        $region23: #{tpu_custom_call.1} parent=11 // pred_region
          %221 = vsyncadd [#allocation3], 0
          %s222 = sshll.u32 %s3, 4
          %s223 = int_to_ptr.hbm [resolvable:$true] %s222
          %s224 = sshll.u32 [#allocation2], 4
          %s225 = int_to_ptr.vmem [resolvable:$true] %s224
          %230 = dma.hbm_to_vmem [thread:$0]  %s223, 2048, %s225, [#allocation3], 64, 64, 4
        $region24: #{tpu_custom_call.1} parent=11 // pred_fallthru
          _
        // Predicated region
        $region25: #{tpu_custom_call.1} parent=11 // pred_check
          %p231 = pneg %p128
        $region26: #{tpu_custom_call.1} parent=11 // pred_check_branch
          %233 = sbr.rel (%p231) target = $region28
        $region27: #{tpu_custom_call.1} parent=11 // pred_region
          _
        $region28: #{tpu_custom_call.1} parent=11 // pred_fallthru
          _
        // Predicated region
        $region29: #{tpu_custom_call.1} parent=11 // pred_check
          %p234 = pneg %p149
        $region30: #{tpu_custom_call.1} parent=11 // pred_check_branch
          %236 = sbr.rel (%p234) target = $region32
        $region31: #{tpu_custom_call.1} parent=11 // pred_region
          %238 = vsyncadd [#allocation6], 0
          %s239 = sshll.u32 %s5, 4
          %s240 = int_to_ptr.hbm [resolvable:$true] %s239
          %s241 = sshll.u32 [#allocation5], 4
          %s242 = int_to_ptr.vmem [resolvable:$true] %s241
          %247 = dma.hbm_to_vmem [thread:$0]  %s240, 1024, %s242, [#allocation6], 64, 64, 4
        $region32: #{tpu_custom_call.1} parent=11 // pred_fallthru
          _
        // Predicated region
        $region33: #{tpu_custom_call.1} parent=11 // pred_check
          %p248 = pneg %p170
        $region34: #{tpu_custom_call.1} parent=11 // pred_check_branch
          %250 = sbr.rel (%p248) target = $region36
        $region35: #{tpu_custom_call.1} parent=11 // pred_region
          _
        $region36: #{tpu_custom_call.1} parent=11 // pred_fallthru
          _
      $region12: #{tpu_custom_call.1} parent=5 // pred_fallthru
        _
      %p251 = scmp.lt.s32.totalorder %s18, 3
      // Predicated region
      $region37: #{tpu_custom_call.1} parent=5 // pred_check
        %p252 = pneg %p251
      $region38: #{tpu_custom_call.1} parent=5 // pred_check_branch
        %254 = sbr.rel (%p252) target = $region40
      $region39: #{tpu_custom_call.1} parent=5 // pred_region
        // Predicated region
        $region41: #{tpu_custom_call.1} parent=39 // pred_check
          %p255 = pneg %p38
        $region42: #{tpu_custom_call.1} parent=39 // pred_check_branch
          %257 = sbr.rel (%p255) target = $region44
        $region43: #{tpu_custom_call.1} parent=39 // pred_region
          %s258 = smul.u32 2, %s18
          %p259 = scmp.lt.s32.totalorder %s258, 5
          %s260 = scalar_select %p259, %s258, 5
          %s261 = smul.addr %s260, 8
          %s262 = scalar_lea.vmem %s0, %s261
          %s263 = smul.u32 2, %s18
        $region44: #{tpu_custom_call.1} parent=39 // pred_fallthru
          _
      $region40: #{tpu_custom_call.1} parent=5 // pred_fallthru
        _
      %p264 = scmp.le.s32.totalorder 1, %s18
      %p265 = scmp.lt.s32.totalorder %s18, 4
      %p266 = pnand %p264, %p265
      %p267 = pneg %p266
      // Predicated region
      $region45: #{tpu_custom_call.1} parent=5 // pred_check
        _
      $region46: #{tpu_custom_call.1} parent=5 // pred_check_branch
        %269 = sbr.rel (%p266) target = $region48
      $region47: #{tpu_custom_call.1} parent=5 // pred_region
        %s270 = ssub.s32 %s18, 1
        // Predicated region
        $region49: #{tpu_custom_call.1} parent=47 // pred_check
          %p271 = pneg %p107
        $region50: #{tpu_custom_call.1} parent=47 // pred_check_branch
          %273 = sbr.rel (%p271) target = $region52
        $region51: #{tpu_custom_call.1} parent=47 // pred_region
          %275 = dma.done [#allocation3], 2048
        $region52: #{tpu_custom_call.1} parent=47 // pred_fallthru
          _
        // Predicated region
        $region53: #{tpu_custom_call.1} parent=47 // pred_check
          %p276 = pneg %p149
        $region54: #{tpu_custom_call.1} parent=47 // pred_check_branch
          %278 = sbr.rel (%p276) target = $region56
        $region55: #{tpu_custom_call.1} parent=47 // pred_region
          %280 = dma.done [#allocation6], 1024
        $region56: #{tpu_custom_call.1} parent=47 // pred_fallthru
          _
        %s281 = smul.u32 2, %s23
        %p282 = scmp.lt.s32.totalorder %s281, 5
        %s283 = scalar_select %p282, %s281, 5
        %s284 = smul.addr %s283, 8
        %s285 = scalar_lea.vmem %s0, %s284
        %p286 = pneg %p44
        %p287 = pneg %p41
        %p288 = pneg %p65
        %p289 = pneg %p62
        %p290 = pneg %p86
        %p291 = pneg %p83
        %p292 = pneg %p107
        %p293 = pneg %p104
        %p294 = pneg %p128
        %p295 = pneg %p125
        %p296 = pneg %p149
        %p297 = pneg %p146
        %p298 = pneg %p170
        %p299 = pneg %p167
        %p300 = pneg %p196
        %p301 = pneg %p193
        %s302 = sand.u32 %s183, 1
        %s303 = scalar_lea.sflag [#allocation4], %s302
        %s304 = sand.u32 %s183, 1
        %s305 = smul.addr %s304, 16
        %s306 = scalar_lea.vmem [#allocation7], %s305
        %s307 = smul.u32 2, %s23
        %p308 = scmp.lt.s32.totalorder %s307, 5
        %s309 = scalar_select %p308, %s307, 5
        %s310 = smul.addr %s309, 8
        %s311 = scalar_lea.vmem %s0, %s310
        %s312 = smul.u32 2, %s23
        %s313 = smul.u32 2, %s23
        %v315 = vld [vmem:[%s311] sm:$0xff]
        %v316 = vld [vmem:[%s311 + $0x8] sm:$0xff]
        %v317 = vpack.c.bf16 %v316, %v315
        %v318 = vld [vmem:[%s1] sm:$0x7]
        %v319 = vld [vmem:[%s2] sm:$0x1]
        %v321 = vperm.slane %v319, 0
        %vm323 = vcmask 48128
        %v325 = vsel %vm323, %v317, 0
        %vm327 = vcmask 1042432
        %v329 = vsel %vm327, %v318, 0
        %331 = vmatpush.bf16.msra.mxu0 0
        %332 = vmatpush.bf16.msra.mxu0 0
        %333 = vmatpush.bf16.msra.mxu0 0
        %334 = vmatpush.bf16.msra.mxu0 0
        %335 = vmatpush.bf16.msra.mxu0 0
        %336 = vmatpush.bf16.msra.mxu0 0
        %337 = vmatpush.bf16.msra.mxu0 0
        %338 = vmatpush.bf16.msra.mxu0 %v329
        %339 = vmatmul.bf16.gmra.mxu0 %v325
        %v340 = vpop.f32.mrf.mxu0
        %v341 = vadd.f32 %v321, %v340
        %v342 = vpop.f32.mrf.mxu0
        %v343 = vadd.f32 %v321, %v342
        %344 = vdwg.mxu0
        %v345 = vpack.c.bf16 %v343, %v341
        %v346 = vld [vmem:[#allocation2] sm:$0xf]
        %v347 = vld [vmem:[#allocation2 + $0x4] sm:$0xf]
        %v348 = vld [vmem:[#allocation2 + $0x8] sm:$0xf]
        %v349 = vld [vmem:[#allocation2 + $0xc] sm:$0xf]
        %v350 = vld [vmem:[#allocation2 + $0x10] sm:$0xf]
        %v351 = vld [vmem:[#allocation2 + $0x14] sm:$0xf]
        %v352 = vld [vmem:[#allocation2 + $0x18] sm:$0xf]
        %v353 = vld [vmem:[#allocation2 + $0x1c] sm:$0xf]
        %v354 = vld [vmem:[#allocation2 + $0x20] sm:$0xf]
        %v355 = vld [vmem:[#allocation2 + $0x24] sm:$0xf]
        %v356 = vld [vmem:[#allocation2 + $0x28] sm:$0xf]
        %v357 = vld [vmem:[#allocation2 + $0x2c] sm:$0xf]
        %v358 = vld [vmem:[#allocation2 + $0x30] sm:$0xf]
        %v359 = vld [vmem:[#allocation2 + $0x34] sm:$0xf]
        %v360 = vld [vmem:[#allocation2 + $0x38] sm:$0xf]
        %v361 = vld [vmem:[#allocation2 + $0x3c] sm:$0xf]
        %v362 = vld [vmem:[%s4] sm:$0x1]
        %v364 = vperm.slane %v362, 0
        %v382 = vunpack.c.l.b16 %v346
        %v383 = vunpack.c.l.b16 %v347
        %v384 = vunpack.c.l.b16 %v348
        %v385 = vunpack.c.l.b16 %v349
        %v386 = vunpack.c.l.b16 %v350
        %v387 = vunpack.c.l.b16 %v351
        %v388 = vunpack.c.l.b16 %v352
        %v389 = vunpack.c.l.b16 %v353
        %v390 = vunpack.c.l.b16 %v354
        %v391 = vunpack.c.l.b16 %v355
        %v392 = vunpack.c.l.b16 %v356
        %v393 = vunpack.c.l.b16 %v357
        %v394 = vunpack.c.l.b16 %v358
        %v395 = vunpack.c.l.b16 %v359
        %v396 = vunpack.c.l.b16 %v360
        %v397 = vunpack.c.l.b16 %v361
        %v398 = vpack.c.b16 %v383, %v382
        %v399 = vpack.c.b16 %v385, %v384
        %v400 = vpack.c.b16 %v387, %v386
        %v401 = vpack.c.b16 %v389, %v388
        %v402 = vpack.c.b16 %v391, %v390
        %v403 = vpack.c.b16 %v393, %v392
        %v404 = vpack.c.b16 %v395, %v394
        %v405 = vpack.c.b16 %v397, %v396
        %414 = vmatpush.bf16.msra.mxu0 %v405
        %415 = vmatpush.bf16.msra.mxu0 %v404
        %416 = vmatpush.bf16.msra.mxu0 %v403
        %417 = vmatpush.bf16.msra.mxu0 %v402
        %418 = vmatpush.bf16.msra.mxu0 %v401
        %419 = vmatpush.bf16.msra.mxu0 %v400
        %420 = vmatpush.bf16.msra.mxu0 %v399
        %421 = vmatpush.bf16.msra.mxu0 %v398
        %422 = vmatmul.bf16.gmra.mxu0 %v345
        %v423 = vpop.f32.mrf.mxu0
        %v424 = vadd.f32 %v364, %v423
        %v425 = vpop.f32.mrf.mxu0
        %v426 = vadd.f32 %v364, %v425
        %427 = vdwg.mxu0
        %v428 = vmax.f32 %v424, 0.0
        %v429 = vmax.f32 %v426, 0.0
        %v430 = vpack.c.bf16 %v429, %v428
        %s431 = scalar_lea.vmem [#allocation2], 64
        %v432 = vld [vmem:[%s431] sm:$0xf]
        %v433 = vld [vmem:[%s431 + $0x4] sm:$0xf]
        %v434 = vld [vmem:[%s431 + $0x8] sm:$0xf]
        %v435 = vld [vmem:[%s431 + $0xc] sm:$0xf]
        %v436 = vld [vmem:[%s431 + $0x10] sm:$0xf]
        %v437 = vld [vmem:[%s431 + $0x14] sm:$0xf]
        %v438 = vld [vmem:[%s431 + $0x18] sm:$0xf]
        %v439 = vld [vmem:[%s431 + $0x1c] sm:$0xf]
        %v440 = vld [vmem:[%s431 + $0x20] sm:$0xf]
        %v441 = vld [vmem:[%s431 + $0x24] sm:$0xf]
        %v442 = vld [vmem:[%s431 + $0x28] sm:$0xf]
        %v443 = vld [vmem:[%s431 + $0x2c] sm:$0xf]
        %v444 = vld [vmem:[%s431 + $0x30] sm:$0xf]
        %v445 = vld [vmem:[%s431 + $0x34] sm:$0xf]
        %v446 = vld [vmem:[%s431 + $0x38] sm:$0xf]
        %v447 = vld [vmem:[%s431 + $0x3c] sm:$0xf]
        %s448 = scalar_lea.vmem %s4, 1
        %v449 = vld [vmem:[%s448] sm:$0x1]
        %v451 = vperm.slane %v449, 0
        %v469 = vunpack.c.l.b16 %v432
        %v470 = vunpack.c.l.b16 %v433
        %v471 = vunpack.c.l.b16 %v434
        %v472 = vunpack.c.l.b16 %v435
        %v473 = vunpack.c.l.b16 %v436
        %v474 = vunpack.c.l.b16 %v437
        %v475 = vunpack.c.l.b16 %v438
        %v476 = vunpack.c.l.b16 %v439
        %v477 = vunpack.c.l.b16 %v440
        %v478 = vunpack.c.l.b16 %v441
        %v479 = vunpack.c.l.b16 %v442
        %v480 = vunpack.c.l.b16 %v443
        %v481 = vunpack.c.l.b16 %v444
        %v482 = vunpack.c.l.b16 %v445
        %v483 = vunpack.c.l.b16 %v446
        %v484 = vunpack.c.l.b16 %v447
        %v485 = vpack.c.b16 %v470, %v469
        %v486 = vpack.c.b16 %v472, %v471
        %v487 = vpack.c.b16 %v474, %v473
        %v488 = vpack.c.b16 %v476, %v475
        %v489 = vpack.c.b16 %v478, %v477
        %v490 = vpack.c.b16 %v480, %v479
        %v491 = vpack.c.b16 %v482, %v481
        %v492 = vpack.c.b16 %v484, %v483
        %501 = vmatpush.bf16.msra.mxu0 %v492
        %502 = vmatpush.bf16.msra.mxu0 %v491
        %503 = vmatpush.bf16.msra.mxu0 %v490
        %504 = vmatpush.bf16.msra.mxu0 %v489
        %505 = vmatpush.bf16.msra.mxu0 %v488
        %506 = vmatpush.bf16.msra.mxu0 %v487
        %507 = vmatpush.bf16.msra.mxu0 %v486
        %508 = vmatpush.bf16.msra.mxu0 %v485
        %509 = vmatmul.bf16.gmra.mxu0 %v430
        %v510 = vpop.f32.mrf.mxu0
        %v511 = vadd.f32 %v451, %v510
        %v512 = vpop.f32.mrf.mxu0
        %v513 = vadd.f32 %v451, %v512
        %514 = vdwg.mxu0
        %v515 = vmax.f32 %v511, 0.0
        %v516 = vmax.f32 %v513, 0.0
        %v517 = vpack.c.bf16 %v516, %v515
        %v518 = vld [vmem:[#allocation5] sm:$0xf]
        %v519 = vld [vmem:[#allocation5 + $0x4] sm:$0xf]
        %v520 = vld [vmem:[#allocation5 + $0x8] sm:$0xf]
        %v521 = vld [vmem:[#allocation5 + $0xc] sm:$0xf]
        %v522 = vld [vmem:[#allocation5 + $0x10] sm:$0xf]
        %v523 = vld [vmem:[#allocation5 + $0x14] sm:$0xf]
        %v524 = vld [vmem:[#allocation5 + $0x18] sm:$0xf]
        %v525 = vld [vmem:[#allocation5 + $0x1c] sm:$0xf]
        %v526 = vld [vmem:[#allocation5 + $0x20] sm:$0xf]
        %v527 = vld [vmem:[#allocation5 + $0x24] sm:$0xf]
        %v528 = vld [vmem:[#allocation5 + $0x28] sm:$0xf]
        %v529 = vld [vmem:[#allocation5 + $0x2c] sm:$0xf]
        %v530 = vld [vmem:[#allocation5 + $0x30] sm:$0xf]
        %v531 = vld [vmem:[#allocation5 + $0x34] sm:$0xf]
        %v532 = vld [vmem:[#allocation5 + $0x38] sm:$0xf]
        %v533 = vld [vmem:[#allocation5 + $0x3c] sm:$0xf]
        %v534 = vld [vmem:[%s6] sm:$0x1]
        %v536 = vperm.slane %v534, 0
        %v554 = vunpack.c.l.b16 %v518
        %v555 = vunpack.c.l.b16 %v519
        %v556 = vunpack.c.l.b16 %v520
        %v557 = vunpack.c.l.b16 %v521
        %v558 = vunpack.c.l.b16 %v522
        %v559 = vunpack.c.l.b16 %v523
        %v560 = vunpack.c.l.b16 %v524
        %v561 = vunpack.c.l.b16 %v525
        %v562 = vunpack.c.l.b16 %v526
        %v563 = vunpack.c.l.b16 %v527
        %v564 = vunpack.c.l.b16 %v528
        %v565 = vunpack.c.l.b16 %v529
        %v566 = vunpack.c.l.b16 %v530
        %v567 = vunpack.c.l.b16 %v531
        %v568 = vunpack.c.l.b16 %v532
        %v569 = vunpack.c.l.b16 %v533
        %v570 = vpack.c.b16 %v555, %v554
        %v571 = vpack.c.b16 %v557, %v556
        %v572 = vpack.c.b16 %v559, %v558
        %v573 = vpack.c.b16 %v561, %v560
        %v574 = vpack.c.b16 %v563, %v562
        %v575 = vpack.c.b16 %v565, %v564
        %v576 = vpack.c.b16 %v567, %v566
        %v577 = vpack.c.b16 %v569, %v568
        %586 = vmatpush.bf16.msra.mxu0 %v577
        %587 = vmatpush.bf16.msra.mxu0 %v576
        %588 = vmatpush.bf16.msra.mxu0 %v575
        %589 = vmatpush.bf16.msra.mxu0 %v574
        %590 = vmatpush.bf16.msra.mxu0 %v573
        %591 = vmatpush.bf16.msra.mxu0 %v572
        %592 = vmatpush.bf16.msra.mxu0 %v571
        %593 = vmatpush.bf16.msra.mxu0 %v570
        %594 = vmatmul.bf16.gmra.mxu0 %v517
        %v595 = vpop.f32.mrf.mxu0
        %v596 = vadd.f32 %v536, %v595
        %v597 = vpop.f32.mrf.mxu0
        %v598 = vadd.f32 %v536, %v597
        %599 = vdwg.mxu0
        %600 = vst [vmem:[%s306] sm:$0xff] %v596
        %601 = vst [vmem:[%s306 + $0x8] sm:$0xff] %v598
        %s602 = sand.u32 %s183, 1
        %s603 = scalar_lea.sflag [#allocation4], %s602
        %s604 = sand.u32 %s183, 1
        %s605 = smul.addr %s604, 16
        %s606 = scalar_lea.vmem [#allocation7], %s605
        // Predicated region
        $region57: #{tpu_custom_call.1} parent=47 // pred_check
          %p607 = pneg %p193
        $region58: #{tpu_custom_call.1} parent=47 // pred_check_branch
          %609 = sbr.rel (%p607) target = $region60
        $region59: #{tpu_custom_call.1} parent=47 // pred_region
          %s610 = smul.u32 2, %s23
          %612 = vsyncadd %s603, 0
          %s613 = smul.addr %s610, 8
          %s614 = scalar_lea.hbm %s7, %s613
          %s615 = sshll.u32 %s606, 4
          %s616 = int_to_ptr.vmem [resolvable:$true] %s615
          %s617 = sshll.u32 %s614, 4
          %s618 = int_to_ptr.hbm [resolvable:$true] %s617
          %623 = dma.vmem_to_hbm [thread:$0]  %s616, 256, %s618, %s603, 128, 128, 8
        $region60: #{tpu_custom_call.1} parent=47 // pred_fallthru
          _
      $region48: #{tpu_custom_call.1} parent=5 // pred_fallthru
        _
      %p624 = scmp.le.s32.totalorder 2, %s18
      // Predicated region
      $region61: #{tpu_custom_call.1} parent=5 // pred_check
        %p625 = pneg %p624
      $region62: #{tpu_custom_call.1} parent=5 // pred_check_branch
        %627 = sbr.rel (%p625) target = $region64
      $region63: #{tpu_custom_call.1} parent=5 // pred_region
        %s628 = ssub.s32 %s18, 2
        // Predicated region
        $region65: #{tpu_custom_call.1} parent=63 // pred_check
          %p629 = pneg %p199
        $region66: #{tpu_custom_call.1} parent=63 // pred_check_branch
          %631 = sbr.rel (%p629) target = $region68
        $region67: #{tpu_custom_call.1} parent=63 // pred_region
          %s632 = sand.u32 %s184, 1
          %s633 = scalar_lea.sflag [#allocation4], %s632
          %s634 = sand.u32 %s184, 1
          %s635 = smul.addr %s634, 16
          %s636 = scalar_lea.vmem [#allocation7], %s635
          %638 = dma.done %s633, 256
        $region68: #{tpu_custom_call.1} parent=63 // pred_fallthru
          _
      $region64: #{tpu_custom_call.1} parent=5 // pred_fallthru
        _
    $region6: #{tpu_custom_call.1} parent=1 // loop_footer
      %s22 = sadd.s32 1, %s18
    $region7: #{tpu_custom_call.1} parent=1 // loop_footer_branch
      %17 = sbr.rel target = $region3
    $region8: #{tpu_custom_call.1} parent=1 // loop_exit
      _
    %639 = vsyncpa [#allocation3], 1
    %s640 = scalar_lea.sflag [#allocation3], 1
    %641 = vsyncpa %s640, 1
    %642 = vsyncpa [#allocation6], 1
    %643 = vsyncpa [#allocation4], 1
    %s644 = scalar_lea.sflag [#allocation4], 1
    %645 = vsyncpa %s644, 1

</llo_original>
